<compile_context>
chip_gen: v7x
topology: tpu7x:2x2x1
jax: 0.10.0
libtpu: 0.0.40
codegen_flags: <defaults>
</compile_context>

<pallas_src>
import functools

import jax
import jax.numpy as jnp
from jax.experimental import pallas as pl
from jax.experimental.pallas import tpu as pltpu


def _mlp_lancer_kernel(zp_ref, zt_ref,
                       w0_ref, b0_ref,
                       w1_ref, b1_ref,
                       wo_ref, bo_ref,
                       out_ref, *, compute_dtype):
    # Elementwise squared difference (VPU).
    x = zt_ref[...] - zp_ref[...]
    x = (x * x).astype(compute_dtype)

    # Hidden layer 0: Linear + ReLU (MXU, f32 accumulation; bias/ReLU in f32).
    h = jnp.dot(x, w0_ref[...].astype(compute_dtype),
                preferred_element_type=jnp.float32)
    h = jnp.maximum(h + b0_ref[...], 0.0)

    # Hidden layer 1: Linear + ReLU.
    h = jnp.dot(h.astype(compute_dtype), w1_ref[...].astype(compute_dtype),
                preferred_element_type=jnp.float32)
    h = jnp.maximum(h + b1_ref[...], 0.0)

    # Output layer: Wout/bout are zero-padded to a 128-multiple N in the
    # wrapper, so this dot and the store below are lane-dense.
    o = jnp.dot(h.astype(compute_dtype), wo_ref[...].astype(compute_dtype),
                preferred_element_type=jnp.float32)
    out_ref[...] = jnp.maximum(o + bo_ref[...], 0.0).astype(out_ref.dtype)


def _pick_batch_tile(batch):
    """Largest multiple-of-8 divisor of `batch` up to 2048, else the full batch."""
    best = None
    for tb in range(8, min(batch, 2048) + 1, 8):
        if batch % tb == 0:
            best = tb
    return best if best is not None else batch


def mlp_lancer_forward(z_pred, z_true, params, *, batch_tile=None,
                       use_bf16=False):
    """Fused (z_true - z_pred)^2 -> MLP forward in a single Pallas kernel.

    z_pred, z_true: [B, z_dim] float32
    params: dict with w0 (z_dim, H), b0 (1, H), w1 (H, H), b1 (1, H),
            wo (H, f_dim), bo (1, f_dim)   (x @ W + b layout)
    """
    assert z_pred.shape == z_true.shape
    B, z_dim = z_pred.shape
    H = params["w0"].shape[1]
    f_dim = params["wo"].shape[1]

    # Lane-dense output padding (f_dim=1 -> 128): avoids masked 1-lane stores.
    f_pad = ((f_dim + 127) // 128) * 128
    wo = params["wo"]
    bo = params["bo"]
    if f_pad != f_dim:
        wo = jnp.pad(wo, ((0, 0), (0, f_pad - f_dim)))
        bo = jnp.pad(bo, ((0, 0), (0, f_pad - f_dim)))

    tb = _pick_batch_tile(B) if batch_tile is None else batch_tile
    assert B % tb == 0
    grid = (B // tb,)

    compute_dtype = jnp.bfloat16 if use_bf16 else jnp.float32
    kernel = functools.partial(_mlp_lancer_kernel, compute_dtype=compute_dtype)

    def batch_spec(feat):
        return pl.BlockSpec((tb, feat), lambda i: (i, 0))

    def const_spec(r, c):
        # Weight/bias blocks never change across the grid -> single-buffer
        # them so the pipeliner does not reserve 2x VMEM for them.
        try:
            return pl.BlockSpec((r, c), lambda i: (0, 0),
                                pipeline_mode=pl.Buffered(buffer_count=1))
        except (AttributeError, TypeError):
            return pl.BlockSpec((r, c), lambda i: (0, 0))

    # TODO(synk): for very large layer_size (H >= ~2048) add a K/N reduction
    # grid axis ("arbitrary") with a VMEM accumulator instead of keeping
    # W1/Wout fully resident (needed on v7x's 64 MiB VMEM).
    out_padded = pl.pallas_call(
        kernel,
        out_shape=jax.ShapeDtypeStruct((B, f_pad), jnp.float32),
        grid_spec=pltpu.PrefetchScalarGridSpec(
            num_scalar_prefetch=0,
            grid=grid,
            in_specs=[
                batch_spec(z_dim),            # z_pred
                batch_spec(z_dim),            # z_true
                const_spec(z_dim, H),         # w0
                const_spec(1, H),             # b0
                const_spec(H, H),             # w1
                const_spec(1, H),             # b1
                const_spec(H, f_pad),         # wo (lane-padded)
                const_spec(1, f_pad),         # bo (lane-padded)
            ],
            out_specs=batch_spec(f_pad),
        ),
        compiler_params=pltpu.CompilerParams(
            dimension_semantics=("parallel",),
            vmem_limit_bytes=64 * 1024 * 1024),
    )(z_pred, z_true,
      params["w0"], params["b0"],
      params["w1"], params["b1"],
      wo, bo)

    return out_padded[:, :f_dim]


def init_params(key, z_dim, layer_size, f_dim):
    """Deterministic synthetic parameter init (shapes match nn.Linear stack)."""
    k0, k1, k2 = jax.random.split(key, 3)
    scale = 0.1
    return {
        "w0": scale * jax.random.normal(k0, (z_dim, layer_size), jnp.float32),
        "b0": jnp.full((1, layer_size), 0.01, jnp.float32),
        "w1": scale * jax.random.normal(k1, (layer_size, layer_size), jnp.float32),
        "b1": jnp.full((1, layer_size), 0.01, jnp.float32),
        "wo": scale * jax.random.normal(k2, (layer_size, f_dim), jnp.float32),
        "bo": jnp.full((1, f_dim), 0.01, jnp.float32),
    }


def _reference_forward(z_pred, z_true, p):
    x = jnp.square(z_true - z_pred)
    h = jnp.maximum(x @ p["w0"] + p["b0"], 0.0)
    h = jnp.maximum(h @ p["w1"] + p["b1"], 0.0)
    return jnp.maximum(h @ p["wo"] + p["bo"], 0.0)


if __name__ == "__main__":
    # MLPLancer(z_dim=16, f_dim=1, n_layers=2, layer_size=32, ...)
    # NOTE: at these tiny shapes the run is launch-overhead bound and plain
    # jitted XLA (_reference_forward) is the sensible deployment; the Pallas
    # path pays off at large batch sizes (batch tiles of 512-2048 rows).
    B, z_dim, layer_size, f_dim = 8, 16, 32, 1

    key = jax.random.PRNGKey(0)
    kzp, kzt, kparam = jax.random.split(key, 3)
    z_pred = jax.random.normal(kzp, (B, z_dim), jnp.float32)
    z_true = jax.random.normal(kzt, (B, z_dim), jnp.float32)
    params = init_params(kparam, z_dim, layer_size, f_dim)

    ref = _reference_forward(z_pred, z_true, params)

    # f32 path: matches the PyTorch/XLA reference tightly.
    out = mlp_lancer_forward(z_pred, z_true, params)
    out = jax.block_until_ready(out)
    assert out.shape == (B, f_dim)
    assert jnp.allclose(out, ref, atol=1e-5, rtol=1e-5)

    # bf16-operand path (v6e/v7x MXU), f32 accumulation: relaxed tolerance.
    out_bf16 = mlp_lancer_forward(z_pred, z_true, params, use_bf16=True)
    out_bf16 = jax.block_until_ready(out_bf16)
    assert out_bf16.shape == (B, f_dim)
    assert jnp.allclose(out_bf16, ref, atol=5e-2, rtol=5e-2)

    print("KERNEL_OK")
</pallas_src>

<mosaic_0001>
module attributes {stable_mosaic.version = 11 : i64} {
  func.func @_mlp_lancer_kernel(%arg0: i32, %arg1: memref<8x16xf32, #tpu.memory_space<vmem>>, %arg2: memref<8x16xf32, #tpu.memory_space<vmem>>, %arg3: memref<16x32xf32, #tpu.memory_space<vmem>>, %arg4: memref<1x32xf32, #tpu.memory_space<vmem>>, %arg5: memref<32x32xf32, #tpu.memory_space<vmem>>, %arg6: memref<1x32xf32, #tpu.memory_space<vmem>>, %arg7: memref<32x128xf32, #tpu.memory_space<vmem>>, %arg8: memref<1x128xf32, #tpu.memory_space<vmem>>, %arg9: memref<8x128xf32, #tpu.memory_space<vmem>>) attributes {dimension_semantics = [#tpu.dimension_semantics<parallel>], iteration_bounds = array<i64: 1>, scalar_prefetch = 0 : i64, scratch_operands = 0 : i64, tpu.core_type = #tpu.core_type<tc>, window_params = [{transform_indices = @transform_0, window_bounds = array<i64: 8, 16>}, {transform_indices = @transform_1, window_bounds = array<i64: 8, 16>}, {pipeline_mode = #tpu.pipeline_mode<synchronous>, transform_indices = @transform_2, window_bounds = array<i64: 16, 32>}, {pipeline_mode = #tpu.pipeline_mode<synchronous>, transform_indices = @transform_3, window_bounds = array<i64: 1, 32>}, {pipeline_mode = #tpu.pipeline_mode<synchronous>, transform_indices = @transform_4, window_bounds = array<i64: 32, 32>}, {pipeline_mode = #tpu.pipeline_mode<synchronous>, transform_indices = @transform_5, window_bounds = array<i64: 1, 32>}, {pipeline_mode = #tpu.pipeline_mode<synchronous>, transform_indices = @transform_6, window_bounds = array<i64: 32, 128>}, {pipeline_mode = #tpu.pipeline_mode<synchronous>, transform_indices = @transform_7, window_bounds = array<i64: 1, 128>}, {transform_indices = @transform_8, window_bounds = array<i64: 8, 128>}]} {
    %c0 = arith.constant 0 : index
    %c0_0 = arith.constant 0 : index
    %0 = vector.load %arg2[%c0, %c0_0] : memref<8x16xf32, #tpu.memory_space<vmem>>, vector<8x16xf32>
    %c0_1 = arith.constant 0 : index
    %c0_2 = arith.constant 0 : index
    %1 = vector.load %arg1[%c0_1, %c0_2] : memref<8x16xf32, #tpu.memory_space<vmem>>, vector<8x16xf32>
    %2 = arith.subf %0, %1 : vector<8x16xf32>
    %3 = arith.mulf %2, %2 : vector<8x16xf32>
    %c0_3 = arith.constant 0 : index
    %c0_4 = arith.constant 0 : index
    %4 = vector.load %arg3[%c0_3, %c0_4] : memref<16x32xf32, #tpu.memory_space<vmem>>, vector<16x32xf32>
    %cst = arith.constant dense<0.000000e+00> : vector<8x32xf32>
    %5 = tpu.matmul %3, %4, %cst {dimension_numbers = #tpu.dot_dimension_numbers<[1], [0], [0], [1], [0, 0, 1, 1], [], []>} : vector<8x16xf32>, vector<16x32xf32>, vector<8x32xf32> -> vector<8x32xf32>
    %c0_5 = arith.constant 0 : index
    %c0_6 = arith.constant 0 : index
    %6 = vector.load %arg4[%c0_5, %c0_6] : memref<1x32xf32, #tpu.memory_space<vmem>>, vector<1x32xf32>
    %7 = vector.broadcast %6 : vector<1x32xf32> to vector<8x32xf32>
    %8 = arith.addf %5, %7 : vector<8x32xf32>
    %cst_7 = arith.constant 0.000000e+00 : f32
    %9 = vector.broadcast %cst_7 : f32 to vector<8x32xf32>
    %10 = arith.maximumf %8, %9 : vector<8x32xf32>
    %c0_8 = arith.constant 0 : index
    %c0_9 = arith.constant 0 : index
    %11 = vector.load %arg5[%c0_8, %c0_9] : memref<32x32xf32, #tpu.memory_space<vmem>>, vector<32x32xf32>
    %cst_10 = arith.constant dense<0.000000e+00> : vector<8x32xf32>
    %12 = tpu.matmul %10, %11, %cst_10 {dimension_numbers = #tpu.dot_dimension_numbers<[1], [0], [0], [1], [0, 0, 1, 1], [], []>} : vector<8x32xf32>, vector<32x32xf32>, vector<8x32xf32> -> vector<8x32xf32>
    %c0_11 = arith.constant 0 : index
    %c0_12 = arith.constant 0 : index
    %13 = vector.load %arg6[%c0_11, %c0_12] : memref<1x32xf32, #tpu.memory_space<vmem>>, vector<1x32xf32>
    %14 = vector.broadcast %13 : vector<1x32xf32> to vector<8x32xf32>
    %15 = arith.addf %12, %14 : vector<8x32xf32>
    %cst_13 = arith.constant 0.000000e+00 : f32
    %16 = vector.broadcast %cst_13 : f32 to vector<8x32xf32>
    %17 = arith.maximumf %15, %16 : vector<8x32xf32>
    %c0_14 = arith.constant 0 : index
    %c0_15 = arith.constant 0 : index
    %18 = vector.load %arg7[%c0_14, %c0_15] : memref<32x128xf32, #tpu.memory_space<vmem>>, vector<32x128xf32>
    %cst_16 = arith.constant dense<0.000000e+00> : vector<8x128xf32>
    %19 = tpu.matmul %17, %18, %cst_16 {dimension_numbers = #tpu.dot_dimension_numbers<[1], [0], [0], [1], [0, 0, 1, 1], [], []>} : vector<8x32xf32>, vector<32x128xf32>, vector<8x128xf32> -> vector<8x128xf32>
    %c0_17 = arith.constant 0 : index
    %c0_18 = arith.constant 0 : index
    %20 = vector.load %arg8[%c0_17, %c0_18] : memref<1x128xf32, #tpu.memory_space<vmem>>, vector<1x128xf32>
    %21 = vector.broadcast %20 : vector<1x128xf32> to vector<8x128xf32>
    %22 = arith.addf %19, %21 : vector<8x128xf32>
    %cst_19 = arith.constant 0.000000e+00 : f32
    %23 = vector.broadcast %cst_19 : f32 to vector<8x128xf32>
    %24 = arith.maximumf %22, %23 : vector<8x128xf32>
    %c0_20 = arith.constant 0 : index
    %c0_21 = arith.constant 0 : index
    %25 = vector.load %arg9[%c0_20, %c0_21] : memref<8x128xf32, #tpu.memory_space<vmem>>, vector<8x128xf32>
    tpu.vector_store %arg9[%c0_20, %c0_21], %24 {strides = array<i32>} : memref<8x128xf32, #tpu.memory_space<vmem>>, vector<8x128xf32>,
    return
  }
  func.func @transform_0(%arg0: i32) -> (i32, i32) {
    %c0_i32 = arith.constant 0 : i32
    %c0_i32_0 = arith.constant 0 : i32
    return %arg0, %c0_i32 : i32, i32
  }
  func.func @transform_1(%arg0: i32) -> (i32, i32) {
    %c0_i32 = arith.constant 0 : i32
    %c0_i32_0 = arith.constant 0 : i32
    return %arg0, %c0_i32 : i32, i32
  }
  func.func @transform_2(%arg0: i32) -> (i32, i32) {
    %c0_i32 = arith.constant 0 : i32
    %c0_i32_0 = arith.constant 0 : i32
    %c0_i32_1 = arith.constant 0 : i32
    return %c0_i32, %c0_i32_0 : i32, i32
  }
  func.func @transform_3(%arg0: i32) -> (i32, i32) {
    %c0_i32 = arith.constant 0 : i32
    %c0_i32_0 = arith.constant 0 : i32
    %c0_i32_1 = arith.constant 0 : i32
    return %c0_i32, %c0_i32_0 : i32, i32
  }
  func.func @transform_4(%arg0: i32) -> (i32, i32) {
    %c0_i32 = arith.constant 0 : i32
    %c0_i32_0 = arith.constant 0 : i32
    %c0_i32_1 = arith.constant 0 : i32
    return %c0_i32, %c0_i32_0 : i32, i32
  }
  func.func @transform_5(%arg0: i32) -> (i32, i32) {
    %c0_i32 = arith.constant 0 : i32
    %c0_i32_0 = arith.constant 0 : i32
    %c0_i32_1 = arith.constant 0 : i32
    return %c0_i32, %c0_i32_0 : i32, i32
  }
  func.func @transform_6(%arg0: i32) -> (i32, i32) {
    %c0_i32 = arith.constant 0 : i32
    %c0_i32_0 = arith.constant 0 : i32
    %c0_i32_1 = arith.constant 0 : i32
    return %c0_i32, %c0_i32_0 : i32, i32
  }
  func.func @transform_7(%arg0: i32) -> (i32, i32) {
    %c0_i32 = arith.constant 0 : i32
    %c0_i32_0 = arith.constant 0 : i32
    %c0_i32_1 = arith.constant 0 : i32
    return %c0_i32, %c0_i32_0 : i32, i32
  }
  func.func @transform_8(%arg0: i32) -> (i32, i32) {
    %c0_i32 = arith.constant 0 : i32
    %c0_i32_0 = arith.constant 0 : i32
    return %arg0, %c0_i32 : i32, i32
  }
}

</mosaic_0001>

<llo_original>
// kernel: tpu_custom_call.1
$region0: #{tpu_custom_call.1}
  #allocation0 [shape = 'u32[]', space=smem, size = 0x4, offset = 0x4, fixed_abs, tag = 'smem constant byte address 0x4 - core index']
  #allocation1 [shape = 'u32[144,128]{1,0:T(1,128)}', space=vmem, size = 0x12000, scoped, tag = 'internal scratch']
  %s0 = inlined_call_operand.hbm [shape: f32[8,16], index: 0, kind: input, shape index: {}]
  %s1 = inlined_call_operand.hbm [shape: f32[8,16], index: 1, kind: input, shape index: {}]
  %s2 = inlined_call_operand.hbm [shape: f32[16,32], index: 2, kind: input, shape index: {}]
  %s3 = inlined_call_operand.hbm [shape: f32[1,32], index: 3, kind: input, shape index: {}]
  %s4 = inlined_call_operand.hbm [shape: f32[32,32], index: 4, kind: input, shape index: {}]
  %s5 = inlined_call_operand.hbm [shape: f32[1,32], index: 5, kind: input, shape index: {}]
  %s6 = inlined_call_operand.hbm [shape: f32[32,128], index: 6, kind: input, shape index: {}]
  %s7 = inlined_call_operand.hbm [shape: f32[1,128], index: 7, kind: input, shape index: {}]
  %s8 = inlined_call_operand.hbm [shape: f32[8,128], index: 8, kind: output, shape index: {}]
  %s9 = sld [smem:[#allocation0]]
  $region74: #{tpu_custom_call.1} parent=0
    _
  %s11 = ssub.s32 1, %s9
  %s12 = scalar_select 0, %s11, %s9
  $region1: #{tpu_custom_call.1} parent=0
    #allocation2 [shape = 'u8[4096]{0}', space=vmem, size = 0x1000, scoped, tag = 'input window, operand 0, single buffered']
    #allocation3 [shape = 's32[1]{0}', space=sflag, size = 0x4, scoped, tag = 'scoped memory for tpu_custom_call.1']
    #allocation4 [shape = 's32[1]{0}', space=sflag, size = 0x4, scoped, tag = 'scoped memory for tpu_custom_call.1']
    #allocation5 [shape = 'u8[4096]{0}', space=vmem, size = 0x1000, scoped, tag = 'input window, operand 1, single buffered']
    #allocation6 [shape = 's32[1]{0}', space=sflag, size = 0x4, scoped, tag = 'scoped memory for tpu_custom_call.1']
    #allocation7 [shape = 'u8[8192]{0}', space=vmem, size = 0x2000, scoped, tag = 'input window, operand 2, single buffered']
    #allocation8 [shape = 'u8[512]{0}', space=vmem, size = 0x400, scoped, tag = 'input window, operand 3, single buffered']
    #allocation9 [shape = 's32[1]{0}', space=sflag, size = 0x4, scoped, tag = 'scoped memory for tpu_custom_call.1']
    #allocation10 [shape = 'u8[16384]{0}', space=vmem, size = 0x4000, scoped, tag = 'input window, operand 4, single buffered']
    #allocation11 [shape = 'u8[512]{0}', space=vmem, size = 0x400, scoped, tag = 'input window, operand 5, single buffered']
    #allocation12 [shape = 's32[1]{0}', space=sflag, size = 0x4, scoped, tag = 'scoped memory for tpu_custom_call.1']
    #allocation13 [shape = 'u8[16384]{0}', space=vmem, size = 0x4000, scoped, tag = 'input window, operand 6, single buffered']
    #allocation14 [shape = 'u8[512]{0}', space=vmem, size = 0x400, scoped, tag = 'input window, operand 7, single buffered']
    #allocation15 [shape = 's32[1]{0}', space=sflag, size = 0x4, scoped, tag = 'scoped memory for tpu_custom_call.1']
    #allocation16 [shape = 'u8[4096]{0}', space=vmem, size = 0x1000, scoped, tag = 'output window, operand 0, single buffered']
    %13 = vsyncpa [#allocation3], 0
    %14 = vsyncpa [#allocation6], 0
    %15 = vsyncpa [#allocation9], 0
    %16 = vsyncpa [#allocation12], 0
    %17 = vsyncpa [#allocation15], 0
    %18 = vsyncpa [#allocation4], 0
    // Predicated region
    $region2: #{tpu_custom_call.1} parent=1 // pred_check
      _
    $region3: #{tpu_custom_call.1} parent=1 // pred_check_branch
      %20 = sbr.rel (0) target = $region5
    $region4: #{tpu_custom_call.1} parent=1 // pred_region
      %s22 = ssub.s32 128, 128
      %23 = vsyncadd [#allocation3], %s22
      %s25 = sshll.u32 [#allocation2], 4
      %s26 = int_to_ptr.vmem [resolvable:$true] %s25
      %28 = dma.hbm_to_vmem [thread:$0]  %s0, 128, %s26, [#allocation3]
    $region5: #{tpu_custom_call.1} parent=1 // pred_fallthru
      _
    // Predicated region
    $region6: #{tpu_custom_call.1} parent=1 // pred_check
      _
    $region7: #{tpu_custom_call.1} parent=1 // pred_check_branch
      %30 = sbr.rel (0) target = $region9
    $region8: #{tpu_custom_call.1} parent=1 // pred_region
      %s32 = ssub.s32 128, 128
      %33 = vsyncadd [#allocation6], %s32
      %s35 = sshll.u32 [#allocation5], 4
      %s36 = int_to_ptr.vmem [resolvable:$true] %s35
      %38 = dma.hbm_to_vmem [thread:$0]  %s1, 128, %s36, [#allocation6]
    $region9: #{tpu_custom_call.1} parent=1 // pred_fallthru
      _
    // Predicated region
    $region10: #{tpu_custom_call.1} parent=1 // pred_check
      _
    $region11: #{tpu_custom_call.1} parent=1 // pred_check_branch
      %40 = sbr.rel (0) target = $region13
    $region12: #{tpu_custom_call.1} parent=1 // pred_region
      %s42 = ssub.s32 256, 256
      %43 = vsyncadd [#allocation6], %s42
      %s44 = sshll.u32 [#allocation7], 4
      %s45 = int_to_ptr.vmem [resolvable:$true] %s44
      %50 = dma.hbm_to_vmem [thread:$0]  %s2, 256, %s45, [#allocation6], 128, 128, 8
    $region13: #{tpu_custom_call.1} parent=1 // pred_fallthru
      _
    // Predicated region
    $region14: #{tpu_custom_call.1} parent=1 // pred_check
      _
    $region15: #{tpu_custom_call.1} parent=1 // pred_check_branch
      %52 = sbr.rel (0) target = $region17
    $region16: #{tpu_custom_call.1} parent=1 // pred_region
      %s54 = ssub.s32 16, 16
      %55 = vsyncadd [#allocation9], %s54
      %s57 = sshll.u32 [#allocation8], 4
      %s58 = int_to_ptr.vmem [resolvable:$true] %s57
      %60 = dma.hbm_to_vmem [thread:$0]  %s3, 16, %s58, [#allocation9]
    $region17: #{tpu_custom_call.1} parent=1 // pred_fallthru
      _
    // Predicated region
    $region18: #{tpu_custom_call.1} parent=1 // pred_check
      _
    $region19: #{tpu_custom_call.1} parent=1 // pred_check_branch
      %62 = sbr.rel (0) target = $region21
    $region20: #{tpu_custom_call.1} parent=1 // pred_region
      %s64 = ssub.s32 512, 512
      %65 = vsyncadd [#allocation9], %s64
      %s66 = sshll.u32 [#allocation10], 4
      %s67 = int_to_ptr.vmem [resolvable:$true] %s66
      %72 = dma.hbm_to_vmem [thread:$0]  %s4, 512, %s67, [#allocation9], 128, 128, 8
    $region21: #{tpu_custom_call.1} parent=1 // pred_fallthru
      _
    // Predicated region
    $region22: #{tpu_custom_call.1} parent=1 // pred_check
      _
    $region23: #{tpu_custom_call.1} parent=1 // pred_check_branch
      %74 = sbr.rel (0) target = $region25
    $region24: #{tpu_custom_call.1} parent=1 // pred_region
      %s76 = ssub.s32 16, 16
      %77 = vsyncadd [#allocation12], %s76
      %s79 = sshll.u32 [#allocation11], 4
      %s80 = int_to_ptr.vmem [resolvable:$true] %s79
      %82 = dma.hbm_to_vmem [thread:$0]  %s5, 16, %s80, [#allocation12]
    $region25: #{tpu_custom_call.1} parent=1 // pred_fallthru
      _
    // Predicated region
    $region26: #{tpu_custom_call.1} parent=1 // pred_check
      _
    $region27: #{tpu_custom_call.1} parent=1 // pred_check_branch
      %84 = sbr.rel (0) target = $region29
    $region28: #{tpu_custom_call.1} parent=1 // pred_region
      %s86 = ssub.s32 512, 512
      %87 = vsyncadd [#allocation12], %s86
      %s88 = sshll.u32 [#allocation13], 4
      %s89 = int_to_ptr.vmem [resolvable:$true] %s88
      %94 = dma.hbm_to_vmem [thread:$0]  %s6, 512, %s89, [#allocation12], 128, 128, 8
    $region29: #{tpu_custom_call.1} parent=1 // pred_fallthru
      _
    // Predicated region
    $region30: #{tpu_custom_call.1} parent=1 // pred_check
      _
    $region31: #{tpu_custom_call.1} parent=1 // pred_check_branch
      %96 = sbr.rel (0) target = $region33
    $region32: #{tpu_custom_call.1} parent=1 // pred_region
      %s98 = ssub.s32 16, 16
      %99 = vsyncadd [#allocation15], %s98
      %s101 = sshll.u32 [#allocation14], 4
      %s102 = int_to_ptr.vmem [resolvable:$true] %s101
      %104 = dma.hbm_to_vmem [thread:$0]  %s7, 16, %s102, [#allocation15]
    $region33: #{tpu_custom_call.1} parent=1 // pred_fallthru
      _
    // Predicated region
    $region34: #{tpu_custom_call.1} parent=1 // pred_check
      _
    $region35: #{tpu_custom_call.1} parent=1 // pred_check_branch
      %106 = sbr.rel (0) target = $region37
    $region36: #{tpu_custom_call.1} parent=1 // pred_region
      %107 = dma.done [#allocation3], 128
    $region37: #{tpu_custom_call.1} parent=1 // pred_fallthru
      _
    // Predicated region
    $region38: #{tpu_custom_call.1} parent=1 // pred_check
      _
    $region39: #{tpu_custom_call.1} parent=1 // pred_check_branch
      %109 = sbr.rel (0) target = $region41
    $region40: #{tpu_custom_call.1} parent=1 // pred_region
      %110 = dma.done [#allocation6], 128
    $region41: #{tpu_custom_call.1} parent=1 // pred_fallthru
      _
    // Predicated region
    $region42: #{tpu_custom_call.1} parent=1 // pred_check
      _
    $region43: #{tpu_custom_call.1} parent=1 // pred_check_branch
      %112 = sbr.rel (0) target = $region45
    $region44: #{tpu_custom_call.1} parent=1 // pred_region
      %113 = dma.done [#allocation6], 256
    $region45: #{tpu_custom_call.1} parent=1 // pred_fallthru
      _
    // Predicated region
    $region46: #{tpu_custom_call.1} parent=1 // pred_check
      _
    $region47: #{tpu_custom_call.1} parent=1 // pred_check_branch
      %115 = sbr.rel (0) target = $region49
    $region48: #{tpu_custom_call.1} parent=1 // pred_region
      %116 = dma.done [#allocation9], 16
    $region49: #{tpu_custom_call.1} parent=1 // pred_fallthru
      _
    // Predicated region
    $region50: #{tpu_custom_call.1} parent=1 // pred_check
      _
    $region51: #{tpu_custom_call.1} parent=1 // pred_check_branch
      %118 = sbr.rel (0) target = $region53
    $region52: #{tpu_custom_call.1} parent=1 // pred_region
      %119 = dma.done [#allocation9], 512
    $region53: #{tpu_custom_call.1} parent=1 // pred_fallthru
      _
    // Predicated region
    $region54: #{tpu_custom_call.1} parent=1 // pred_check
      _
    $region55: #{tpu_custom_call.1} parent=1 // pred_check_branch
      %121 = sbr.rel (0) target = $region57
    $region56: #{tpu_custom_call.1} parent=1 // pred_region
      %122 = dma.done [#allocation12], 16
    $region57: #{tpu_custom_call.1} parent=1 // pred_fallthru
      _
    // Predicated region
    $region58: #{tpu_custom_call.1} parent=1 // pred_check
      _
    $region59: #{tpu_custom_call.1} parent=1 // pred_check_branch
      %124 = sbr.rel (0) target = $region61
    $region60: #{tpu_custom_call.1} parent=1 // pred_region
      %125 = dma.done [#allocation12], 512
    $region61: #{tpu_custom_call.1} parent=1 // pred_fallthru
      _
    // Predicated region
    $region62: #{tpu_custom_call.1} parent=1 // pred_check
      _
    $region63: #{tpu_custom_call.1} parent=1 // pred_check_branch
      %127 = sbr.rel (0) target = $region65
    $region64: #{tpu_custom_call.1} parent=1 // pred_region
      %128 = dma.done [#allocation15], 16
    $region65: #{tpu_custom_call.1} parent=1 // pred_fallthru
      _
    %v129 = vld [vmem:[#allocation5] sm:$0xff]
    %v130 = vld [vmem:[#allocation2] sm:$0xff]
    %v131 = vsub.f32 %v129, %v130
    %v132 = vmul.f32 %v131, %v131
    %v133 = vld [vmem:[#allocation7] sm:$0xff]
    %v134 = vld [vmem:[#allocation7 + $0x8] sm:$0xff]
    %v135 = vld [vmem:[#allocation8] sm:$0x1]
    %v137 = vlaneseq
    %v138 = vshrl.u32 %v137, 7
    %v139 = vsub.s32 0, %v138
    %v140 = vrot.slane %v135, %v139
    %vm142 = vcmask 130048
    %v144 = vsel %vm142, %v132, 0
    %146 = vmatprep.subr.mxu0 0.0
    %147 = vmatpush1.msra.mxu0 %v133
    %148 = vmatprep.subr.mxu0 0.0
    %149 = vmatpush1.msra.mxu0 %v134
    %150 = vmatprep.subr.mxu0 0.0
    %151 = vmatpush1.msra.mxu0 0.0
    %152 = vmatprep.subr.mxu0 0.0
    %153 = vmatpush1.msra.mxu0 0.0
    %154 = vmatprep.subr.mxu0 0.0
    %155 = vmatpush1.msra.mxu0 0.0
    %156 = vmatprep.subr.mxu0 0.0
    %157 = vmatpush1.msra.mxu0 0.0
    %158 = vmatprep.subr.mxu0 0.0
    %159 = vmatpush1.msra.mxu0 0.0
    %160 = vmatprep.subr.mxu0 0.0
    %161 = vmatpush1.msra.mxu0 0.0
    %162 = vmatprep.subr.mxu0 0.0
    %163 = vmatpush1.msra.mxu0 0.0
    %164 = vmatprep.subr.mxu0 0.0
    %165 = vmatpush1.msra.mxu0 0.0
    %166 = vmatprep.subr.mxu0 0.0
    %167 = vmatpush1.msra.mxu0 0.0
    %168 = vmatprep.subr.mxu0 0.0
    %169 = vmatpush1.msra.mxu0 0.0
    %170 = vmatprep.subr.mxu0 0.0
    %171 = vmatpush1.msra.mxu0 0.0
    %172 = vmatprep.subr.mxu0 0.0
    %173 = vmatpush1.msra.mxu0 0.0
    %174 = vmatprep.subr.mxu0 0.0
    %175 = vmatpush1.msra.mxu0 0.0
    %176 = vmatprep.subr.mxu0 0.0
    %177 = vmatpush1.msra.mxu0 0.0
    %178 = vmatprep.subr.mxu0 0.0
    %179 = vmatpush1.msra.mxu0 0.0
    %180 = vmatprep.subr.mxu0 0.0
    %181 = vmatpush1.msra.mxu0 0.0
    %182 = vmatprep.subr.mxu0 0.0
    %183 = vmatpush1.msra.mxu0 0.0
    %184 = vmatprep.subr.mxu0 0.0
    %185 = vmatpush1.msra.mxu0 0.0
    %186 = vmatprep.subr.mxu0 0.0
    %187 = vmatpush1.msra.mxu0 0.0
    %188 = vmatprep.subr.mxu0 0.0
    %189 = vmatpush1.msra.mxu0 0.0
    %190 = vmatprep.subr.mxu0 0.0
    %191 = vmatpush1.msra.mxu0 0.0
    %192 = vmatprep.subr.mxu0 0.0
    %193 = vmatpush1.msra.mxu0 0.0
    %194 = vmatprep.subr.mxu0 0.0
    %195 = vmatpush1.msra.mxu0 0.0
    %196 = vmatprep.subr.mxu0 0.0
    %197 = vmatpush1.msra.mxu0 0.0
    %198 = vmatprep.subr.mxu0 0.0
    %199 = vmatpush1.msra.mxu0 0.0
    %200 = vmatprep.subr.mxu0 0.0
    %201 = vmatpush1.msra.mxu0 0.0
    %202 = vmatprep.subr.mxu0 0.0
    %203 = vmatpush1.msra.mxu0 0.0
    %204 = vmatprep.subr.mxu0 0.0
    %205 = vmatpush1.msra.mxu0 0.0
    %206 = vmatprep.subr.mxu0 0.0
    %207 = vmatpush1.msra.mxu0 0.0
    %208 = vmatprep.subr.mxu0 0.0
    %209 = vmatpush1.msra.mxu0 0.0
    %210 = vmatprep.mubr.f32.mxu0 0.0
    %211 = vmatmul.mubr.f32.gmra.mrb[0].mxu0 %v144
    %v212 = vpop.f32.mrb[0].mxu0
    %v213 = vadd.f32 %v140, %v212
    %v214 = vpop.f32.mrb[0].mxu0
    %215 = vdwg.mxu0
    %v216 = vmax.f32 %v213, 0.0
    %v217 = vld [vmem:[#allocation10] sm:$0xff]
    %v218 = vld [vmem:[#allocation10 + $0x8] sm:$0xff]
    %v219 = vld [vmem:[#allocation10 + $0x10] sm:$0xff]
    %v220 = vld [vmem:[#allocation10 + $0x18] sm:$0xff]
    %v221 = vld [vmem:[#allocation11] sm:$0x1]
    %v223 = vlaneseq
    %v224 = vshrl.u32 %v223, 7
    %v225 = vsub.s32 0, %v224
    %v226 = vrot.slane %v221, %v225
    %vm228 = vcmask 261120
    %v230 = vsel %vm228, %v216, 0
    %232 = vmatprep.subr.mxu0 0.0
    %233 = vmatpush1.msra.mxu0 %v217
    %234 = vmatprep.subr.mxu0 0.0
    %235 = vmatpush1.msra.mxu0 %v218
    %236 = vmatprep.subr.mxu0 0.0
    %237 = vmatpush1.msra.mxu0 %v219
    %238 = vmatprep.subr.mxu0 0.0
    %239 = vmatpush1.msra.mxu0 %v220
    %240 = vmatprep.subr.mxu0 0.0
    %241 = vmatpush1.msra.mxu0 0.0
    %242 = vmatprep.subr.mxu0 0.0
    %243 = vmatpush1.msra.mxu0 0.0
    %244 = vmatprep.subr.mxu0 0.0
    %245 = vmatpush1.msra.mxu0 0.0
    %246 = vmatprep.subr.mxu0 0.0
    %247 = vmatpush1.msra.mxu0 0.0
    %248 = vmatprep.subr.mxu0 0.0
    %249 = vmatpush1.msra.mxu0 0.0
    %250 = vmatprep.subr.mxu0 0.0
    %251 = vmatpush1.msra.mxu0 0.0
    %252 = vmatprep.subr.mxu0 0.0
    %253 = vmatpush1.msra.mxu0 0.0
    %254 = vmatprep.subr.mxu0 0.0
    %255 = vmatpush1.msra.mxu0 0.0
    %256 = vmatprep.subr.mxu0 0.0
    %257 = vmatpush1.msra.mxu0 0.0
    %258 = vmatprep.subr.mxu0 0.0
    %259 = vmatpush1.msra.mxu0 0.0
    %260 = vmatprep.subr.mxu0 0.0
    %261 = vmatpush1.msra.mxu0 0.0
    %262 = vmatprep.subr.mxu0 0.0
    %263 = vmatpush1.msra.mxu0 0.0
    %264 = vmatprep.subr.mxu0 0.0
    %265 = vmatpush1.msra.mxu0 0.0
    %266 = vmatprep.subr.mxu0 0.0
    %267 = vmatpush1.msra.mxu0 0.0
    %268 = vmatprep.subr.mxu0 0.0
    %269 = vmatpush1.msra.mxu0 0.0
    %270 = vmatprep.subr.mxu0 0.0
    %271 = vmatpush1.msra.mxu0 0.0
    %272 = vmatprep.subr.mxu0 0.0
    %273 = vmatpush1.msra.mxu0 0.0
    %274 = vmatprep.subr.mxu0 0.0
    %275 = vmatpush1.msra.mxu0 0.0
    %276 = vmatprep.subr.mxu0 0.0
    %277 = vmatpush1.msra.mxu0 0.0
    %278 = vmatprep.subr.mxu0 0.0
    %279 = vmatpush1.msra.mxu0 0.0
    %280 = vmatprep.subr.mxu0 0.0
    %281 = vmatpush1.msra.mxu0 0.0
    %282 = vmatprep.subr.mxu0 0.0
    %283 = vmatpush1.msra.mxu0 0.0
    %284 = vmatprep.subr.mxu0 0.0
    %285 = vmatpush1.msra.mxu0 0.0
    %286 = vmatprep.subr.mxu0 0.0
    %287 = vmatpush1.msra.mxu0 0.0
    %288 = vmatprep.subr.mxu0 0.0
    %289 = vmatpush1.msra.mxu0 0.0
    %290 = vmatprep.subr.mxu0 0.0
    %291 = vmatpush1.msra.mxu0 0.0
    %292 = vmatprep.subr.mxu0 0.0
    %293 = vmatpush1.msra.mxu0 0.0
    %294 = vmatprep.subr.mxu0 0.0
    %295 = vmatpush1.msra.mxu0 0.0
    %296 = vmatprep.mubr.f32.mxu0 0.0
    %297 = vmatmul.mubr.f32.gmra.mrb[0].mxu0 %v230
    %v298 = vpop.f32.mrb[0].mxu0
    %v299 = vadd.f32 %v226, %v298
    %v300 = vpop.f32.mrb[0].mxu0
    %301 = vdwg.mxu0
    %v302 = vmax.f32 %v299, 0.0
    %v303 = vld [vmem:[#allocation13] sm:$0xff]
    %v304 = vld [vmem:[#allocation13 + $0x8] sm:$0xff]
    %v305 = vld [vmem:[#allocation13 + $0x10] sm:$0xff]
    %v306 = vld [vmem:[#allocation13 + $0x18] sm:$0xff]
    %v307 = vld [vmem:[#allocation14] sm:$0x1]
    %v309 = vlaneseq
    %v310 = vshrl.u32 %v309, 7
    %v311 = vsub.s32 0, %v310
    %v312 = vrot.slane %v307, %v311
    %v315 = vsel %vm228, %v302, 0
    %317 = vmatprep.subr.mxu0 0.0
    %318 = vmatpush1.msra.mxu0 %v303
    %319 = vmatprep.subr.mxu0 0.0
    %320 = vmatpush1.msra.mxu0 %v304
    %321 = vmatprep.subr.mxu0 0.0
    %322 = vmatpush1.msra.mxu0 %v305
    %323 = vmatprep.subr.mxu0 0.0
    %324 = vmatpush1.msra.mxu0 %v306
    %325 = vmatprep.subr.mxu0 0.0
    %326 = vmatpush1.msra.mxu0 0.0
    %327 = vmatprep.subr.mxu0 0.0
    %328 = vmatpush1.msra.mxu0 0.0
    %329 = vmatprep.subr.mxu0 0.0
    %330 = vmatpush1.msra.mxu0 0.0
    %331 = vmatprep.subr.mxu0 0.0
    %332 = vmatpush1.msra.mxu0 0.0
    %333 = vmatprep.subr.mxu0 0.0
    %334 = vmatpush1.msra.mxu0 0.0
    %335 = vmatprep.subr.mxu0 0.0
    %336 = vmatpush1.msra.mxu0 0.0
    %337 = vmatprep.subr.mxu0 0.0
    %338 = vmatpush1.msra.mxu0 0.0
    %339 = vmatprep.subr.mxu0 0.0
    %340 = vmatpush1.msra.mxu0 0.0
    %341 = vmatprep.subr.mxu0 0.0
    %342 = vmatpush1.msra.mxu0 0.0
    %343 = vmatprep.subr.mxu0 0.0
    %344 = vmatpush1.msra.mxu0 0.0
    %345 = vmatprep.subr.mxu0 0.0
    %346 = vmatpush1.msra.mxu0 0.0
    %347 = vmatprep.subr.mxu0 0.0
    %348 = vmatpush1.msra.mxu0 0.0
    %349 = vmatprep.subr.mxu0 0.0
    %350 = vmatpush1.msra.mxu0 0.0
    %351 = vmatprep.subr.mxu0 0.0
    %352 = vmatpush1.msra.mxu0 0.0
    %353 = vmatprep.subr.mxu0 0.0
    %354 = vmatpush1.msra.mxu0 0.0
    %355 = vmatprep.subr.mxu0 0.0
    %356 = vmatpush1.msra.mxu0 0.0
    %357 = vmatprep.subr.mxu0 0.0
    %358 = vmatpush1.msra.mxu0 0.0
    %359 = vmatprep.subr.mxu0 0.0
    %360 = vmatpush1.msra.mxu0 0.0
    %361 = vmatprep.subr.mxu0 0.0
    %362 = vmatpush1.msra.mxu0 0.0
    %363 = vmatprep.subr.mxu0 0.0
    %364 = vmatpush1.msra.mxu0 0.0
    %365 = vmatprep.subr.mxu0 0.0
    %366 = vmatpush1.msra.mxu0 0.0
    %367 = vmatprep.subr.mxu0 0.0
    %368 = vmatpush1.msra.mxu0 0.0
    %369 = vmatprep.subr.mxu0 0.0
    %370 = vmatpush1.msra.mxu0 0.0
    %371 = vmatprep.subr.mxu0 0.0
    %372 = vmatpush1.msra.mxu0 0.0
    %373 = vmatprep.subr.mxu0 0.0
    %374 = vmatpush1.msra.mxu0 0.0
    %375 = vmatprep.subr.mxu0 0.0
    %376 = vmatpush1.msra.mxu0 0.0
    %377 = vmatprep.subr.mxu0 0.0
    %378 = vmatpush1.msra.mxu0 0.0
    %379 = vmatprep.subr.mxu0 0.0
    %380 = vmatpush1.msra.mxu0 0.0
    %381 = vmatprep.mubr.f32.mxu0 0.0
    %382 = vmatmul.mubr.f32.gmra.mrb[0].mxu0 %v315
    %v383 = vpop.f32.mrb[0].mxu0
    %v384 = vadd.f32 %v312, %v383
    %v385 = vpop.f32.mrb[0].mxu0
    %386 = vdwg.mxu0
    %v387 = vmax.f32 %v384, 0.0
    %388 = vst [vmem:[#allocation16] sm:$0xff] %v387
    // Predicated region
    $region66: #{tpu_custom_call.1} parent=1 // pred_check
      _
    $region67: #{tpu_custom_call.1} parent=1 // pred_check_branch
      %390 = sbr.rel (0) target = $region69
    $region68: #{tpu_custom_call.1} parent=1 // pred_region
      %s392 = ssub.s32 128, 128
      %393 = vsyncadd [#allocation4], %s392
      %s395 = sshll.u32 [#allocation16], 4
      %s396 = int_to_ptr.vmem [resolvable:$true] %s395
      %398 = dma.vmem_to_hbm [thread:$0]  %s396, 128, %s8, [#allocation4]
    $region69: #{tpu_custom_call.1} parent=1 // pred_fallthru
      _
    // Predicated region
    $region70: #{tpu_custom_call.1} parent=1 // pred_check
      _
    $region71: #{tpu_custom_call.1} parent=1 // pred_check_branch
      %400 = sbr.rel (0) target = $region73
    $region72: #{tpu_custom_call.1} parent=1 // pred_region
      %401 = dma.done [#allocation4], 128
    $region73: #{tpu_custom_call.1} parent=1 // pred_fallthru
      _
    %402 = vsyncpa [#allocation3], 1
    %403 = vsyncpa [#allocation6], 1
    %404 = vsyncpa [#allocation9], 1
    %405 = vsyncpa [#allocation12], 1
    %406 = vsyncpa [#allocation15], 1
    %407 = vsyncpa [#allocation4], 1

</llo_original>
